<compile_context>
chip_gen: v7x
topology: tpu7x:2x2x1
jax: 0.10.0
libtpu: 0.0.40
codegen_flags: <defaults>
</compile_context>

<pallas_src>
import numpy as np
import jax
import jax.numpy as jnp
from jax.experimental import pallas as pl
from jax.experimental.pallas import tpu as pltpu


# ----------------------------------------------------------------------------
# db4 filters (PyWavelets convention) and the exact dwt-as-matrix construction
# ----------------------------------------------------------------------------
_REC_LO_DB4 = np.array(
    [0.23037781330885523, 0.7148465705525415, 0.6308807679295904,
     -0.02798376941698385, -0.18703481171888114, 0.030841381835986965,
     0.032883011666982945, -0.010597401784997278], dtype=np.float64)


def _db4_filters():
    rec_lo = _REC_LO_DB4
    F = len(rec_lo)
    dec_lo = rec_lo[::-1].copy()
    # pywt: dec_hi[k] = (-1)^(k+1) * rec_lo[k]  (even-length orthogonal filters)
    dec_hi = np.array([((-1.0) ** (k + 1)) * rec_lo[k] for k in range(F)])
    return dec_lo, dec_hi


def _dwt_matrix(n_in, filt):
    """T of shape (n_out, n_in) s.t. T @ x == pywt single-level DWT coefficients
    (mode='symmetric', along the last axis)."""
    F = len(filt)
    n_out = (n_in + F - 1) // 2
    assert F - 1 <= n_in, "simple mirror extension assumption"
    ext_len = n_in + 2 * (F - 1)
    src = np.empty(ext_len, dtype=np.int64)
    for m in range(ext_len):
        if m < F - 1:                       # left symmetric extension
            src[m] = (F - 2) - m
        elif m < F - 1 + n_in:              # body
            src[m] = m - (F - 1)
        else:                               # right symmetric extension
            src[m] = n_in - 1 - (m - (F - 1) - n_in)
    E = np.zeros((ext_len, n_in))
    E[np.arange(ext_len), src] = 1.0
    T = np.zeros((n_out, n_in))
    for o in range(n_out):
        for j in range(F):
            T[o] += filt[j] * E[(F - 1) + 2 * o + 1 - j]
    return T


def wavelet_packet_matrix(patch_len):
    """(patch_len, 4*L2) matrix M with  x_patch @ M == concat([aa, ad, dd, da])
    of a 2-level db4 WaveletPacket (mode='symmetric')."""
    dec_lo, dec_hi = _db4_filters()
    Ta1 = _dwt_matrix(patch_len, dec_lo)
    Td1 = _dwt_matrix(patch_len, dec_hi)
    L1 = Ta1.shape[0]
    Ta2 = _dwt_matrix(L1, dec_lo)
    Td2 = _dwt_matrix(L1, dec_hi)
    # node order used by the module: 'aa', 'ad', 'dd', 'da'
    M = np.concatenate([Ta2 @ Ta1, Td2 @ Ta1, Td2 @ Td1, Ta2 @ Td1], axis=0)
    return M.T  # (patch_len, 4*L2)


def _round_up(a, m):
    return ((a + m - 1) // m) * m


# ----------------------------------------------------------------------------
# Pallas kernel: one fused matmul (wavelet packet already folded into weight)
# ----------------------------------------------------------------------------
def _embed_kernel(x_ref, w_ref, o_ref):
    # x_ref: (tile, G*K), w_ref: (G*K, G*E) resident constant, o_ref: (tile, G*E)
    o_ref[...] = jnp.dot(x_ref[...], w_ref[...],
                         preferred_element_type=jnp.float32).astype(o_ref.dtype)


def wavelet_embedding(x, w_lin, *, patch_len, patch_stride, patch_padding,
                      row_tile=256, compute_dtype=jnp.float32):
    """x: (B, C, T, V); w_lin: (E, C*28) Linear weight (bias-free).
    Returns (B, V*P, E) float32, matching the PyTorch module's forward."""
    B, C, T, V = x.shape
    E = w_lin.shape[0]
    L = patch_len
    K = C * L

    # --- host glue: ReplicationPad2d((0,0,0,pad)) + unfold(dim=-2) -----------
    # TODO(synk): fold the overlapping-patch extraction into the kernel's input
    # DMA (needs element-offset / overlapping-window index_maps over the time
    # axis); today XLA performs the gather + one transpose of the patched data.
    if patch_padding > 0:
        last = jnp.repeat(x[:, :, -1:, :], patch_padding, axis=2)
        x = jnp.concatenate([x, last], axis=2)
    Tp = T + patch_padding
    P = (Tp - L) // patch_stride + 1
    idx = (jnp.arange(P) * patch_stride)[:, None] + jnp.arange(L)[None, :]  # (P,L)
    patches = x[:, :, idx, :]                          # (B, C, P, L, V)
    patches = jnp.transpose(patches, (0, 4, 2, 1, 3))  # (B, V, P, C, L)
    N = B * V * P
    x_flat = patches.reshape(N, K)

    # --- fuse wavelet-packet operator into the Linear weight (host, f64) -----
    M = wavelet_packet_matrix(L)                       # (L, 28)
    K28 = M.shape[1]
    w = np.asarray(w_lin, np.float64).T.reshape(C, K28, E)      # (C, 28, E)
    Wf = np.einsum('lk,cke->cle', M, w).reshape(K, E)           # (C*L, E) dense

    # --- lane density: pack G patches per kernel row (free reshapes) ---------
    G = 1
    if K < 128 or E < 128:
        G = max(-(-128 // K), -(-128 // E))
        while G > 1 and N % G != 0:
            G -= 1
    Wg = np.zeros((G * K, G * E), dtype=np.float64)
    for j in range(G):
        Wg[j * K:(j + 1) * K, j * E:(j + 1) * E] = Wf
    Wg = jnp.asarray(Wg, compute_dtype)

    Ng = N // G
    xg = x_flat.reshape(Ng, G * K).astype(compute_dtype)

    # tiny sublane-alignment pad only when needed (never a full row_tile pad)
    Ng_pad = _round_up(Ng, 8)
    if Ng_pad != Ng:
        xg = jnp.concatenate(
            [xg, jnp.zeros((Ng_pad - Ng, G * K), xg.dtype)], axis=0)

    # --- row tile: big enough to amortize per-step overhead, but keep >= 2
    #     grid steps when there is enough work (v7x megacore) -----------------
    tile = max(8, min(_round_up(row_tile, 8), Ng_pad))
    if Ng_pad >= 32 and Ng_pad // tile < 2:
        tile = max(8, _round_up(pl.cdiv(Ng_pad, 2), 8))
    grid = pl.cdiv(Ng_pad, tile)
    # VMEM/step ~ 2*tile*G*(K+E)*bytes (double-buffered) + G*K*G*E*bytes for the
    # resident weight — far below the 32 MiB scoped default on v5e/v6e/v7x for
    # tile<=1024; set pltpu.CompilerParams(vmem_limit_bytes=...) if grown.

    out = pl.pallas_call(
        _embed_kernel,
        out_shape=jax.ShapeDtypeStruct((Ng_pad, G * E), jnp.float32),
        grid_spec=pltpu.PrefetchScalarGridSpec(
            num_scalar_prefetch=0,
            grid=(grid,),
            in_specs=[
                pl.BlockSpec((tile, G * K), lambda i: (i, 0)),
                pl.BlockSpec((G * K, G * E), lambda i: (0, 0)),  # resident const
            ],
            out_specs=pl.BlockSpec((tile, G * E), lambda i: (i, 0)),
        ),
        compiler_params=pltpu.CompilerParams(
            dimension_semantics=("parallel",)),
    )(xg, Wg)

    return out[:Ng].reshape(N, E).reshape(B, V * P, E)


# ----------------------------------------------------------------------------
# main
# ----------------------------------------------------------------------------
if __name__ == "__main__":
    # Hyper-params consistent with in_features = in_channels * 28
    # (db4, symmetric, maxlevel=2 on length-8 patches -> 4 * 7 = 28 coeffs).
    B, C, T, V = 2, 4, 16, 4
    E = 32
    patch_len, patch_stride, patch_padding = 8, 4, 4

    key = jax.random.PRNGKey(0)
    kx, kw = jax.random.split(key)
    x = jax.random.normal(kx, (B, C, T, V), dtype=jnp.float32)
    bound = 1.0 / np.sqrt(C * 28)
    w_lin = jax.random.uniform(kw, (E, C * 28), jnp.float32,
                               minval=-bound, maxval=bound)

    y = wavelet_embedding(x, w_lin, patch_len=patch_len,
                          patch_stride=patch_stride,
                          patch_padding=patch_padding)
    y = jax.block_until_ready(y)

    # ---- pure numpy/f64 reference (UN-fused path: per-channel wavelet, then
    # Linear), so it independently checks the fusion / grouping / tiling done
    # by the Pallas path.
    # NOTE: parity with pywt itself (filter sign convention, 'aa/ad/dd/da'
    # ordering) cannot be validated in-script since pywt is unavailable here.
    xp = np.asarray(x, np.float64)
    xp = np.concatenate(
        [xp, np.repeat(xp[:, :, -1:, :], patch_padding, axis=2)], axis=2)
    Tp = T + patch_padding
    P = (Tp - patch_len) // patch_stride + 1
    idx = (np.arange(P) * patch_stride)[:, None] + np.arange(patch_len)[None, :]
    pat = xp[:, :, idx, :]                              # (B,C,P,L,V)
    pat = np.transpose(pat, (0, 4, 2, 1, 3))            # (B,V,P,C,L)
    Mref = wavelet_packet_matrix(patch_len)             # (L,28)
    feats = np.einsum('bvpcl,lk->bvpck', pat, Mref).reshape(B, V * P, C * 28)
    y_ref = feats @ np.asarray(w_lin, np.float64).T     # (B, V*P, E)

    assert y.shape == (B, V * P, E)
    np.testing.assert_allclose(np.asarray(y), y_ref, rtol=1e-4, atol=1e-4)

    # bf16 streaming variant (halves HBM traffic for x / W; f32 MXU accumulate)
    y16 = wavelet_embedding(x, w_lin, patch_len=patch_len,
                            patch_stride=patch_stride,
                            patch_padding=patch_padding,
                            compute_dtype=jnp.bfloat16)
    y16 = jax.block_until_ready(y16)
    np.testing.assert_allclose(np.asarray(y16), y_ref, rtol=3e-2, atol=3e-2)

    print("KERNEL_OK")
</pallas_src>

<mosaic_0001>
module attributes {stable_mosaic.version = 11 : i64} {
  func.func @_embed_kernel(%arg0: i32, %arg1: memref<8x128xf32, #tpu.memory_space<vmem>>, %arg2: memref<128x128xf32, #tpu.memory_space<vmem>>, %arg3: memref<8x128xf32, #tpu.memory_space<vmem>>) attributes {dimension_semantics = [#tpu.dimension_semantics<parallel>], iteration_bounds = array<i64: 1>, scalar_prefetch = 0 : i64, scratch_operands = 0 : i64, tpu.core_type = #tpu.core_type<tc>, window_params = [{transform_indices = @transform_0, window_bounds = array<i64: 8, 128>}, {pipeline_mode = #tpu.pipeline_mode<synchronous>, transform_indices = @transform_1, window_bounds = array<i64: 128, 128>}, {transform_indices = @transform_2, window_bounds = array<i64: 8, 128>}]} {
    %c0 = arith.constant 0 : index
    %c0_0 = arith.constant 0 : index
    %0 = vector.load %arg1[%c0, %c0_0] : memref<8x128xf32, #tpu.memory_space<vmem>>, vector<8x128xf32>
    %c0_1 = arith.constant 0 : index
    %c0_2 = arith.constant 0 : index
    %1 = vector.load %arg2[%c0_1, %c0_2] : memref<128x128xf32, #tpu.memory_space<vmem>>, vector<128x128xf32>
    %cst = arith.constant dense<0.000000e+00> : vector<8x128xf32>
    %2 = tpu.matmul %0, %1, %cst {dimension_numbers = #tpu.dot_dimension_numbers<[1], [0], [0], [1], [0, 0, 1, 1], [], []>} : vector<8x128xf32>, vector<128x128xf32>, vector<8x128xf32> -> vector<8x128xf32>
    %c0_3 = arith.constant 0 : index
    %c0_4 = arith.constant 0 : index
    %3 = vector.load %arg3[%c0_3, %c0_4] : memref<8x128xf32, #tpu.memory_space<vmem>>, vector<8x128xf32>
    tpu.vector_store %arg3[%c0_3, %c0_4], %2 {strides = array<i32>} : memref<8x128xf32, #tpu.memory_space<vmem>>, vector<8x128xf32>,
    return
  }
  func.func @transform_0(%arg0: i32) -> (i32, i32) {
    %c0_i32 = arith.constant 0 : i32
    %c0_i32_0 = arith.constant 0 : i32
    return %arg0, %c0_i32 : i32, i32
  }
  func.func @transform_1(%arg0: i32) -> (i32, i32) {
    %c0_i32 = arith.constant 0 : i32
    %c0_i32_0 = arith.constant 0 : i32
    %c0_i32_1 = arith.constant 0 : i32
    return %c0_i32, %c0_i32_0 : i32, i32
  }
  func.func @transform_2(%arg0: i32) -> (i32, i32) {
    %c0_i32 = arith.constant 0 : i32
    %c0_i32_0 = arith.constant 0 : i32
    return %arg0, %c0_i32 : i32, i32
  }
}

</mosaic_0001>

<llo_original>
// kernel: tpu_custom_call.1
$region0: #{tpu_custom_call.1}
  #allocation0 [shape = 'u32[]', space=smem, size = 0x4, offset = 0x4, fixed_abs, tag = 'smem constant byte address 0x4 - core index']
  #allocation1 [shape = 'u32[144,128]{1,0:T(1,128)}', space=vmem, size = 0x12000, scoped, tag = 'internal scratch']
  %s0 = inlined_call_operand.hbm [shape: f32[8,128], index: 0, kind: input, shape index: {}]
  %s1 = inlined_call_operand.hbm [shape: f32[128,128], index: 1, kind: input, shape index: {}]
  %s2 = inlined_call_operand.hbm [shape: f32[8,128], index: 2, kind: output, shape index: {}]
  %s3 = sld [smem:[#allocation0]]
  $region26: #{tpu_custom_call.1} parent=0
    _
  %s5 = ssub.s32 1, %s3
  %s6 = scalar_select 0, %s5, %s3
  $region1: #{tpu_custom_call.1} parent=0
    #allocation2 [shape = 'u8[4096]{0}', space=vmem, size = 0x1000, scoped, tag = 'input window, operand 0, single buffered']
    #allocation3 [shape = 's32[1]{0}', space=sflag, size = 0x4, scoped, tag = 'scoped memory for tpu_custom_call.1']
    #allocation4 [shape = 's32[1]{0}', space=sflag, size = 0x4, scoped, tag = 'scoped memory for tpu_custom_call.1']
    #allocation5 [shape = 'u8[65536]{0}', space=vmem, size = 0x10000, scoped, tag = 'input window, operand 1, single buffered']
    #allocation6 [shape = 's32[1]{0}', space=sflag, size = 0x4, scoped, tag = 'scoped memory for tpu_custom_call.1']
    #allocation7 [shape = 'u8[4096]{0}', space=vmem, size = 0x1000, scoped, tag = 'output window, operand 0, single buffered']
    %7 = vsyncpa [#allocation3], 0
    %8 = vsyncpa [#allocation6], 0
    %9 = vsyncpa [#allocation4], 0
    // Predicated region
    $region2: #{tpu_custom_call.1} parent=1 // pred_check
      _
    $region3: #{tpu_custom_call.1} parent=1 // pred_check_branch
      %11 = sbr.rel (0) target = $region5
    $region4: #{tpu_custom_call.1} parent=1 // pred_region
      %s13 = ssub.s32 128, 128
      %14 = vsyncadd [#allocation3], %s13
      %s16 = sshll.u32 [#allocation2], 4
      %s17 = int_to_ptr.vmem [resolvable:$true] %s16
      %19 = dma.hbm_to_vmem [thread:$0]  %s0, 128, %s17, [#allocation3]
    $region5: #{tpu_custom_call.1} parent=1 // pred_fallthru
      _
    // Predicated region
    $region6: #{tpu_custom_call.1} parent=1 // pred_check
      _
    $region7: #{tpu_custom_call.1} parent=1 // pred_check_branch
      %21 = sbr.rel (0) target = $region9
    $region8: #{tpu_custom_call.1} parent=1 // pred_region
      %s23 = ssub.s32 2048, 2048
      %24 = vsyncadd [#allocation6], %s23
      %s25 = sshll.u32 [#allocation5], 4
      %s26 = int_to_ptr.vmem [resolvable:$true] %s25
      %31 = dma.hbm_to_vmem [thread:$0]  %s1, 2048, %s26, [#allocation6], 128, 128, 8
    $region9: #{tpu_custom_call.1} parent=1 // pred_fallthru
      _
    // Predicated region
    $region10: #{tpu_custom_call.1} parent=1 // pred_check
      _
    $region11: #{tpu_custom_call.1} parent=1 // pred_check_branch
      %33 = sbr.rel (0) target = $region13
    $region12: #{tpu_custom_call.1} parent=1 // pred_region
      %34 = dma.done [#allocation3], 128
    $region13: #{tpu_custom_call.1} parent=1 // pred_fallthru
      _
    // Predicated region
    $region14: #{tpu_custom_call.1} parent=1 // pred_check
      _
    $region15: #{tpu_custom_call.1} parent=1 // pred_check_branch
      %36 = sbr.rel (0) target = $region17
    $region16: #{tpu_custom_call.1} parent=1 // pred_region
      %37 = dma.done [#allocation6], 2048
    $region17: #{tpu_custom_call.1} parent=1 // pred_fallthru
      _
    %v38 = vld [vmem:[#allocation2] sm:$0xff]
    %v39 = vld [vmem:[#allocation5] sm:$0xff]
    %v40 = vld [vmem:[#allocation5 + $0x8] sm:$0xff]
    %v41 = vld [vmem:[#allocation5 + $0x10] sm:$0xff]
    %v42 = vld [vmem:[#allocation5 + $0x18] sm:$0xff]
    %v43 = vld [vmem:[#allocation5 + $0x20] sm:$0xff]
    %v44 = vld [vmem:[#allocation5 + $0x28] sm:$0xff]
    %v45 = vld [vmem:[#allocation5 + $0x30] sm:$0xff]
    %v46 = vld [vmem:[#allocation5 + $0x38] sm:$0xff]
    %v47 = vld [vmem:[#allocation5 + $0x40] sm:$0xff]
    %v48 = vld [vmem:[#allocation5 + $0x48] sm:$0xff]
    %v49 = vld [vmem:[#allocation5 + $0x50] sm:$0xff]
    %v50 = vld [vmem:[#allocation5 + $0x58] sm:$0xff]
    %v51 = vld [vmem:[#allocation5 + $0x60] sm:$0xff]
    %v52 = vld [vmem:[#allocation5 + $0x68] sm:$0xff]
    %v53 = vld [vmem:[#allocation5 + $0x70] sm:$0xff]
    %v54 = vld [vmem:[#allocation5 + $0x78] sm:$0xff]
    %55 = vmatprep.subr.mxu0 0.0
    %56 = vmatpush1.msra.mxu0 %v39
    %57 = vmatprep.subr.mxu0 0.0
    %58 = vmatpush1.msra.mxu0 %v40
    %59 = vmatprep.subr.mxu0 0.0
    %60 = vmatpush1.msra.mxu0 %v41
    %61 = vmatprep.subr.mxu0 0.0
    %62 = vmatpush1.msra.mxu0 %v42
    %63 = vmatprep.subr.mxu0 0.0
    %64 = vmatpush1.msra.mxu0 %v43
    %65 = vmatprep.subr.mxu0 0.0
    %66 = vmatpush1.msra.mxu0 %v44
    %67 = vmatprep.subr.mxu0 0.0
    %68 = vmatpush1.msra.mxu0 %v45
    %69 = vmatprep.subr.mxu0 0.0
    %70 = vmatpush1.msra.mxu0 %v46
    %71 = vmatprep.subr.mxu0 0.0
    %72 = vmatpush1.msra.mxu0 %v47
    %73 = vmatprep.subr.mxu0 0.0
    %74 = vmatpush1.msra.mxu0 %v48
    %75 = vmatprep.subr.mxu0 0.0
    %76 = vmatpush1.msra.mxu0 %v49
    %77 = vmatprep.subr.mxu0 0.0
    %78 = vmatpush1.msra.mxu0 %v50
    %79 = vmatprep.subr.mxu0 0.0
    %80 = vmatpush1.msra.mxu0 %v51
    %81 = vmatprep.subr.mxu0 0.0
    %82 = vmatpush1.msra.mxu0 %v52
    %83 = vmatprep.subr.mxu0 0.0
    %84 = vmatpush1.msra.mxu0 %v53
    %85 = vmatprep.subr.mxu0 0.0
    %86 = vmatpush1.msra.mxu0 %v54
    %87 = vmatprep.subr.mxu0 0.0
    %88 = vmatpush1.msra.mxu0 0.0
    %89 = vmatprep.subr.mxu0 0.0
    %90 = vmatpush1.msra.mxu0 0.0
    %91 = vmatprep.subr.mxu0 0.0
    %92 = vmatpush1.msra.mxu0 0.0
    %93 = vmatprep.subr.mxu0 0.0
    %94 = vmatpush1.msra.mxu0 0.0
    %95 = vmatprep.subr.mxu0 0.0
    %96 = vmatpush1.msra.mxu0 0.0
    %97 = vmatprep.subr.mxu0 0.0
    %98 = vmatpush1.msra.mxu0 0.0
    %99 = vmatprep.subr.mxu0 0.0
    %100 = vmatpush1.msra.mxu0 0.0
    %101 = vmatprep.subr.mxu0 0.0
    %102 = vmatpush1.msra.mxu0 0.0
    %103 = vmatprep.subr.mxu0 0.0
    %104 = vmatpush1.msra.mxu0 0.0
    %105 = vmatprep.subr.mxu0 0.0
    %106 = vmatpush1.msra.mxu0 0.0
    %107 = vmatprep.subr.mxu0 0.0
    %108 = vmatpush1.msra.mxu0 0.0
    %109 = vmatprep.subr.mxu0 0.0
    %110 = vmatpush1.msra.mxu0 0.0
    %111 = vmatprep.subr.mxu0 0.0
    %112 = vmatpush1.msra.mxu0 0.0
    %113 = vmatprep.subr.mxu0 0.0
    %114 = vmatpush1.msra.mxu0 0.0
    %115 = vmatprep.subr.mxu0 0.0
    %116 = vmatpush1.msra.mxu0 0.0
    %117 = vmatprep.subr.mxu0 0.0
    %118 = vmatpush1.msra.mxu0 0.0
    %119 = vmatprep.mubr.f32.mxu0 0.0
    %120 = vmatmul.mubr.f32.gmra.mrb[0].mxu0 %v38
    %v121 = vpop.f32.mrb[0].mxu0
    %v122 = vadd.f32 0.0, %v121
    %v123 = vpop.f32.mrb[0].mxu0
    %124 = vdwg.mxu0
    %125 = vst [vmem:[#allocation7] sm:$0xff] %v122
    // Predicated region
    $region18: #{tpu_custom_call.1} parent=1 // pred_check
      _
    $region19: #{tpu_custom_call.1} parent=1 // pred_check_branch
      %127 = sbr.rel (0) target = $region21
    $region20: #{tpu_custom_call.1} parent=1 // pred_region
      %s129 = ssub.s32 128, 128
      %130 = vsyncadd [#allocation4], %s129
      %s132 = sshll.u32 [#allocation7], 4
      %s133 = int_to_ptr.vmem [resolvable:$true] %s132
      %135 = dma.vmem_to_hbm [thread:$0]  %s133, 128, %s2, [#allocation4]
    $region21: #{tpu_custom_call.1} parent=1 // pred_fallthru
      _
    // Predicated region
    $region22: #{tpu_custom_call.1} parent=1 // pred_check
      _
    $region23: #{tpu_custom_call.1} parent=1 // pred_check_branch
      %137 = sbr.rel (0) target = $region25
    $region24: #{tpu_custom_call.1} parent=1 // pred_region
      %138 = dma.done [#allocation4], 128
    $region25: #{tpu_custom_call.1} parent=1 // pred_fallthru
      _
    %139 = vsyncpa [#allocation3], 1
    %140 = vsyncpa [#allocation6], 1
    %141 = vsyncpa [#allocation4], 1

</llo_original>
